<compile_context>
chip_gen: v7x
topology: tpu7x:2x2x1
jax: 0.10.0
libtpu: 0.0.40
codegen_flags: <defaults>
</compile_context>

<pallas_src>
import functools

import jax
import jax.numpy as jnp
from jax import lax
from jax.experimental import pallas as pl
from jax.experimental.pallas import tpu as pltpu


def _self_attention_kernel(x_ref, w_ref, b_ref, o_ref, *, bt, d, mxu_dtype, approx_recip):
    """Processes `bt` batch elements per grid step.

    x_ref : (bt, D, S)  input block in the module's native (B, input_dim, seq) layout
    w_ref : (3D, D)     fused [Wq*scale; Wk; Wv], torch (out, in) layout, whole array in VMEM
    b_ref : (3D, 1)     fused bias (score scale folded into the Q rows), whole array in VMEM
    o_ref : (bt, S, D)  output block
    """

    def to_mxu(a):
        return a if (mxu_dtype is None or a.dtype == mxu_dtype) else a.astype(mxu_dtype)

    # Hoisted once per grid step (not per batch element).
    w_m = to_mxu(w_ref[...])                          # (3D, D)
    b_f = b_ref[...].astype(jnp.float32)              # (3D, 1), broadcasts over the S lanes

    def body(i, carry):
        # Fused QKV projection directly on the native (D, S) activation slab:
        # (3D, D) @ (D, S) -> (3D, S).  The feature ("in") axes are contracted in place,
        # so there is no activation transpose, no concat and no weight transpose.
        qkv = lax.dot_general(
            w_m, to_mxu(x_ref[i]),
            (((1,), (0,)), ((), ())),
            preferred_element_type=jnp.float32)        # (3D, S), f32 accumulation
        qkv = qkv + b_f                                # f32 bias add; stats stay f32

        # Slices along the sublane (feature) axis at multiples of D: tile aligned,
        # never cuts through the packed lane dimension.
        q = qkv[:d]                                    # (D, S), 1/sqrt(D) already folded in
        k = qkv[d:2 * d]                               # (D, S)
        v = qkv[2 * d:]                                # (D, S)

        # scores = Q^T K.  Transposed-LHS matmuls are not a reliably supported Mosaic
        # dot_general form, so transpose only Q (a ~1-vreg XLU op on its own VLIW slot)
        # and keep both score/PV matmuls in plain NN / NT MXU forms.
        qt = q.T                                       # (S, D)
        s = lax.dot_general(
            to_mxu(qt), to_mxu(k),
            (((1,), (0,)), ((), ())),
            preferred_element_type=jnp.float32)        # (S, S)

        # Softmax over keys: f32 statistics, normalization deferred past the PV matmul,
        # EUP (approx) reciprocal on its own slot.
        m = jnp.max(s, axis=-1, keepdims=True)
        e = jnp.exp(s - m)
        denom = jnp.sum(e, axis=-1, keepdims=True)     # (S, 1)

        # out = P @ V^T: contract the key axis of the (D, S) value slab (NT form).
        pv = lax.dot_general(
            to_mxu(e), to_mxu(v),
            (((1,), (1,)), ((), ())),
            preferred_element_type=jnp.float32)        # (S, D)

        inv = pl.reciprocal(denom, approx=True) if approx_recip else 1.0 / denom
        o_ref[i] = (pv * inv).astype(o_ref.dtype)
        return carry

    if bt == 1:
        body(0, 0)
    else:
        # Bounded live ranges per batch element (vs. Python unrolling), LLO-visible loop.
        lax.fori_loop(0, bt, body, 0, unroll=True)


def fuse_qkv_params(wq, bq, wk, bk, wv, bv):
    """Precompute fused QKV parameters once (hoisted out of the per-call path).

    Keeps the torch nn.Linear (out, in) layout, concatenates [Q; K; V] along `out`
    and folds the 1/sqrt(D) score scale into the Q projection (weights AND bias).
    """
    d = wq.shape[0]
    scale = 1.0 / (d ** 0.5)
    w_qkv = jnp.concatenate([wq * scale, wk, wv], axis=0)              # (3D, D)
    b_qkv = jnp.concatenate([bq * scale, bk, bv]).reshape(3 * d, 1)     # (3D, 1)
    return w_qkv, b_qkv


def _pick_batch_block(b, s, *, target_tokens=512, min_grid=2):
    """Largest divisor of B such that (a) the grid keeps >= `min_grid` steps whenever B
    allows it (v7x megacore sharding + DMA/compute overlap) and (b) bt*S stays around
    `target_tokens` so the fused-QKV matmul keeps the MXU reasonably full while
    amortizing the ~0.35 us per-grid-step overhead."""
    cap = max(1, b // min_grid)
    cap = min(cap, max(1, target_tokens // max(s, 1)))
    for cand in range(cap, 0, -1):
        if b % cand == 0:
            return cand
    return 1


def _vmem_limit_bytes(bt, d, s, in_itemsize):
    """Scoped-VMEM request derived from the per-step footprint, clamped to [32, 56] MiB:
    32 MiB raises v5e's 16 MiB scoped default; <= 56 MiB stays safely under v7x's 64 MiB
    physical VMEM.  (v6e / v5e have 128 MiB and could go higher for very large blocks.)"""
    f32 = 4
    blocks = 2 * (bt * d * s + bt * s * d) * in_itemsize           # double-buffered x / out
    params = (3 * d * d + 3 * d) * in_itemsize                     # single-buffered fused W / b
    live = (s * 3 * d + 2 * s * s + 2 * s * d + 4 * s) * f32       # per-element intermediates
    est = 2 * (blocks + params + bt * live) + (8 << 20)
    return int(min(max(est, 32 << 20), 56 << 20))


def self_attention_fused(x, w_qkv, b_qkv, *, batch_block=None,
                         mxu_dtype=jnp.bfloat16, approx_reciprocal=True):
    """x: (B, D, S) -- same convention as the PyTorch module's forward input.
    w_qkv/b_qkv: fused parameters from `fuse_qkv_params`.  Returns (B, S, D)."""
    B, D, S = x.shape
    assert w_qkv.shape == (3 * D, D) and b_qkv.shape == (3 * D, 1)

    bt = _pick_batch_block(B, S) if batch_block is None else batch_block
    assert B % bt == 0, "batch_block must divide B"

    kernel = functools.partial(
        _self_attention_kernel, bt=bt, d=D,
        mxu_dtype=mxu_dtype, approx_recip=approx_reciprocal)

    return pl.pallas_call(
        kernel,
        out_shape=jax.ShapeDtypeStruct((B, S, D), x.dtype),
        grid_spec=pltpu.PrefetchScalarGridSpec(
            num_scalar_prefetch=0,
            grid=(B // bt,),
            in_specs=[
                # x in its native layout, double-buffered by the pipeline.
                pl.BlockSpec((bt, D, S), lambda g: (g, 0, 0)),
                # Fused weight / bias: whole array resident in VMEM (constant across the
                # grid) => single-buffered, no redundant per-step DMA or double buffer.
                pl.BlockSpec(memory_space=pltpu.MemorySpace.VMEM),
                pl.BlockSpec(memory_space=pltpu.MemorySpace.VMEM),
            ],
            # Natural (B, S, D) output layout; lane-dense for production D (mult. of 128).
            out_specs=pl.BlockSpec((bt, S, D), lambda g: (g, 0, 0)),
        ),
        compiler_params=pltpu.CompilerParams(
            dimension_semantics=("parallel",),   # batch-block axis shards across TCs (v7x)
            vmem_limit_bytes=_vmem_limit_bytes(bt, D, S, x.dtype.itemsize),
        ),
    )(x, w_qkv, b_qkv)


def self_attention(x, wq, bq, wk, bk, wv, bv, **kwargs):
    """Convenience wrapper taking the torch module's raw parameters.  Prefer calling
    `fuse_qkv_params` once and reusing `self_attention_fused` when parameters persist."""
    w_qkv, b_qkv = fuse_qkv_params(wq, bq, wk, bk, wv, bv)
    return self_attention_fused(x, w_qkv, b_qkv, **kwargs)


def _reference(x, wq, bq, wk, bk, wv, bv):
    # Pure-JAX reference mirroring the torch forward exactly.
    D = x.shape[1]
    xt = jnp.transpose(x, (0, 2, 1))                       # (B, S, D)
    q = xt @ wq.T + bq
    k = xt @ wk.T + bk
    v = xt @ wv.T + bv
    s = jnp.einsum("bqd,bkd->bqk", q, k) / (D ** 0.5)
    a = jax.nn.softmax(s, axis=2)
    return jnp.einsum("bqk,bkd->bqd", a, v)


if __name__ == "__main__":
    B, D, S = 2, 32, 8   # input_dim = 32, sequence length = 8

    key = jax.random.PRNGKey(0)
    kx, kq, kbq, kk, kbk, kv, kbv = jax.random.split(key, 7)

    x = jax.random.normal(kx, (B, D, S), dtype=jnp.float32)
    # nn.Linear parameter shapes: weight (D, D) in (out, in) layout, bias (D,).
    wq = jax.random.normal(kq, (D, D), dtype=jnp.float32) * 0.1
    bq = jax.random.normal(kbq, (D,), dtype=jnp.float32) * 0.1
    wk = jax.random.normal(kk, (D, D), dtype=jnp.float32) * 0.1
    bk = jax.random.normal(kbk, (D,), dtype=jnp.float32) * 0.1
    wv = jax.random.normal(kv, (D, D), dtype=jnp.float32) * 0.1
    bv = jax.random.normal(kbv, (D,), dtype=jnp.float32) * 0.1

    # Fused parameters computed once (cache these across calls in real use).
    w_qkv, b_qkv = fuse_qkv_params(wq, bq, wk, bk, wv, bv)

    ref = _reference(x, wq, bq, wk, bk, wv, bv)

    # Default fast path: bf16 MXU operands + f32 accumulation, approx (EUP) reciprocal.
    out = jax.block_until_ready(self_attention_fused(x, w_qkv, b_qkv))
    assert out.shape == (B, S, D)
    assert jnp.allclose(out, ref, atol=3e-2, rtol=3e-2)

    # Exact path (f32 MXU operands, exact reciprocal) for accuracy-sensitive users.
    out_exact = jax.block_until_ready(
        self_attention_fused(x, w_qkv, b_qkv, mxu_dtype=None, approx_reciprocal=False))
    assert jnp.allclose(out_exact, ref, atol=2e-3, rtol=2e-3)

    print("KERNEL_OK")
</pallas_src>

<mosaic_0001>
module attributes {stable_mosaic.version = 11 : i64} {
  func.func @_self_attention_kernel(%arg0: i32, %arg1: memref<1x32x8xf32, #tpu.memory_space<vmem>>, %arg2: memref<96x32xf32, #tpu.memory_space<vmem>>, %arg3: memref<96x1xf32, #tpu.memory_space<vmem>>, %arg4: memref<1x8x32xf32, #tpu.memory_space<vmem>>) attributes {dimension_semantics = [#tpu.dimension_semantics<parallel>], iteration_bounds = array<i64: 2>, scalar_prefetch = 0 : i64, scratch_operands = 0 : i64, tpu.core_type = #tpu.core_type<tc>, window_params = [{transform_indices = @transform_0, window_bounds = array<i64: 1, 32, 8>}, {pipeline_mode = #tpu.pipeline_mode<synchronous>, transform_indices = @transform_1, window_bounds = array<i64: 96, 32>}, {pipeline_mode = #tpu.pipeline_mode<synchronous>, transform_indices = @transform_2, window_bounds = array<i64: 96, 1>}, {transform_indices = @transform_3, window_bounds = array<i64: 1, 8, 32>}]} {
    %c0 = arith.constant 0 : index
    %c0_0 = arith.constant 0 : index
    %0 = vector.load %arg2[%c0, %c0_0] : memref<96x32xf32, #tpu.memory_space<vmem>>, vector<96x32xf32>
    %1 = arith.truncf %0 : vector<96x32xf32> to vector<96x32xbf16>
    %c0_1 = arith.constant 0 : index
    %c0_2 = arith.constant 0 : index
    %2 = vector.load %arg3[%c0_1, %c0_2] : memref<96x1xf32, #tpu.memory_space<vmem>>, vector<96x1xf32>
    %c0_3 = arith.constant 0 : index
    %c0_4 = arith.constant 0 : index
    %c0_5 = arith.constant 0 : index
    %3 = vector.load %arg1[%c0_3, %c0_4, %c0_5] : memref<1x32x8xf32, #tpu.memory_space<vmem>>, vector<1x32x8xf32>
    %4 = vector.shape_cast %3 : vector<1x32x8xf32> to vector<32x8xf32>
    %5 = arith.truncf %4 : vector<32x8xf32> to vector<32x8xbf16>
    %cst = arith.constant dense<0.000000e+00> : vector<96x8xf32>
    %6 = tpu.matmul %1, %5, %cst {dimension_numbers = #tpu.dot_dimension_numbers<[1], [0], [0], [1], [0, 0, 1, 1], [], []>} : vector<96x32xbf16>, vector<32x8xbf16>, vector<96x8xf32> -> vector<96x8xf32>
    %7 = vector.broadcast %2 : vector<96x1xf32> to vector<96x8xf32>
    %8 = arith.addf %6, %7 : vector<96x8xf32>
    %9 = vector.extract_strided_slice %8 {offsets = [0, 0], sizes = [32, 8], strides = [1, 1]} : vector<96x8xf32> to vector<32x8xf32>
    %10 = vector.extract_strided_slice %8 {offsets = [32, 0], sizes = [32, 8], strides = [1, 1]} : vector<96x8xf32> to vector<32x8xf32>
    %11 = vector.extract_strided_slice %8 {offsets = [64, 0], sizes = [32, 8], strides = [1, 1]} : vector<96x8xf32> to vector<32x8xf32>
    %12 = tpu.transpose %9, [1, 0] : vector<32x8xf32> -> vector<8x32xf32>
    %13 = arith.truncf %12 : vector<8x32xf32> to vector<8x32xbf16>
    %14 = arith.truncf %10 : vector<32x8xf32> to vector<32x8xbf16>
    %cst_6 = arith.constant dense<0.000000e+00> : vector<8x8xf32>
    %15 = tpu.matmul %13, %14, %cst_6 {dimension_numbers = #tpu.dot_dimension_numbers<[1], [0], [0], [1], [0, 0, 1, 1], [], []>} : vector<8x32xbf16>, vector<32x8xbf16>, vector<8x8xf32> -> vector<8x8xf32>
    %cst_7 = arith.constant dense<0xFF800000> : vector<8xf32>
    %16 = vector.multi_reduction <maximumf>, %15, %cst_7 [1] : vector<8x8xf32> to vector<8xf32>
    %17 = vector.shape_cast %16 : vector<8xf32> to vector<8x1xf32>
    %18 = vector.broadcast %17 : vector<8x1xf32> to vector<8x8xf32>
    %19 = arith.subf %15, %18 : vector<8x8xf32>
    %20 = math.exp %19 : vector<8x8xf32>
    %cst_8 = arith.constant dense<0.000000e+00> : vector<8xf32>
    %21 = vector.multi_reduction <add>, %20, %cst_8 [1] : vector<8x8xf32> to vector<8xf32>
    %22 = vector.shape_cast %21 : vector<8xf32> to vector<8x1xf32>
    %23 = arith.truncf %20 : vector<8x8xf32> to vector<8x8xbf16>
    %24 = arith.truncf %11 : vector<32x8xf32> to vector<32x8xbf16>
    %cst_9 = arith.constant dense<0.000000e+00> : vector<8x32xf32>
    %25 = tpu.matmul %23, %24, %cst_9 {dimension_numbers = #tpu.dot_dimension_numbers<[1], [1], [0], [0], [0, 0, 1, 0], [], []>} : vector<8x8xbf16>, vector<32x8xbf16>, vector<8x32xf32> -> vector<8x32xf32>
    %26 = tpu.reciprocal %22 {approx = true} : vector<8x1xf32> -> vector<8x1xf32>
    %27 = vector.broadcast %26 : vector<8x1xf32> to vector<8x32xf32>
    %28 = arith.mulf %25, %27 : vector<8x32xf32>
    %c0_10 = arith.constant 0 : index
    %c0_11 = arith.constant 0 : index
    %c0_12 = arith.constant 0 : index
    %29 = vector.load %arg4[%c0_10, %c0_11, %c0_12] : memref<1x8x32xf32, #tpu.memory_space<vmem>>, vector<1x8x32xf32>
    %30 = vector.shape_cast %29 : vector<1x8x32xf32> to vector<8x32xf32>
    %31 = vector.shape_cast %28 : vector<8x32xf32> to vector<1x8x32xf32>
    tpu.vector_store %arg4[%c0_10, %c0_11, %c0_12], %31 {strides = array<i32>} : memref<1x8x32xf32, #tpu.memory_space<vmem>>, vector<1x8x32xf32>,
    return
  }
  func.func @transform_0(%arg0: i32) -> (i32, i32, i32) {
    %c0_i32 = arith.constant 0 : i32
    %c0_i32_0 = arith.constant 0 : i32
    %c0_i32_1 = arith.constant 0 : i32
    return %arg0, %c0_i32, %c0_i32_0 : i32, i32, i32
  }
  func.func @transform_1(%arg0: i32) -> (i32, i32) {
    %c0_i32 = arith.constant 0 : i32
    %c0_i32_0 = arith.constant 0 : i32
    %c0_i32_1 = arith.constant 0 : i32
    return %c0_i32, %c0_i32_0 : i32, i32
  }
  func.func @transform_2(%arg0: i32) -> (i32, i32) {
    %c0_i32 = arith.constant 0 : i32
    %c0_i32_0 = arith.constant 0 : i32
    %c0_i32_1 = arith.constant 0 : i32
    return %c0_i32, %c0_i32_0 : i32, i32
  }
  func.func @transform_3(%arg0: i32) -> (i32, i32, i32) {
    %c0_i32 = arith.constant 0 : i32
    %c0_i32_0 = arith.constant 0 : i32
    %c0_i32_1 = arith.constant 0 : i32
    return %arg0, %c0_i32, %c0_i32_0 : i32, i32, i32
  }
}

</mosaic_0001>

<llo_original>
// kernel: tpu_custom_call.1
$region0: #{tpu_custom_call.1}
  #allocation0 [shape = 'u32[]', space=smem, size = 0x4, offset = 0x4, fixed_abs, tag = 'smem constant byte address 0x4 - core index']
  #allocation1 [shape = 'u32[144,128]{1,0:T(1,128)}', space=vmem, size = 0x12000, scoped, tag = 'internal scratch']
  %s0 = inlined_call_operand.vmem [shape: f32[2,32,8], index: 0, kind: input, shape index: {}]
  %s1 = inlined_call_operand.vmem [shape: f32[96,32], index: 1, kind: input, shape index: {}]
  %s2 = inlined_call_operand.vmem [shape: f32[96,1], index: 2, kind: input, shape index: {}]
  %s3 = inlined_call_operand.hbm [shape: f32[2,8,32], index: 3, kind: output, shape index: {}]
  %s4 = sld [smem:[#allocation0]]
  $region45: #{tpu_custom_call.1} parent=0
    _
  %s6 = ssub.s32 1, %s4
  %s7 = scalar_select 0, %s6, %s4
  $region1: #{tpu_custom_call.1} parent=0
    #allocation2 [shape = 'u8[8192]{0}', space=vmem, size = 0x2000, scoped, tag = 'output window, operand 0']
    #allocation3 [shape = 's32[2]{0}', space=sflag, size = 0x8, scoped, tag = 'scoped memory for tpu_custom_call.1']
    %8 = vsyncpa [#allocation3], 0
    %s9 = scalar_lea.sflag [#allocation3], 1
    %10 = vsyncpa %s9, 0
    loop: start=0, step=1, limit=4
    $region2: #{tpu_custom_call.1} parent=1 // loop_pre_header
      _
    $region3: #{tpu_custom_call.1} parent=1 // loop_header
      %s12 = sphi 0, %s16
      %p13 = scmp.ge.s32.totalorder %s12, 4
      %s22 = sphi 0, %s24
      %s25 = sphi 0, %s22
      %s26 = sphi 0, %s25
      %s42 = sphi 0, %s26
      %s46 = sphi 0, %s46
      %s48 = sphi 0, %s46
      %s49 = sphi 0, %s48
      %s63 = sphi 0, %s49
      %s67 = sphi 0, %s67
      %s69 = sphi 0, %s67
      %s70 = sphi 0, %s69
      %s84 = sphi 0, %s70
      %s90 = sphi 0, %s92
      %s93 = sphi 0, %s90
      %s94 = sphi 0, %s93
      %s110 = sphi 0, %s94
    $region4: #{tpu_custom_call.1} parent=1 // loop_header_branch
      %15 = sbr.rel (%p13) target = $region8
    $region5: #{tpu_custom_call.1} parent=1 // loop_body
      %s17 = ssub.s32 %s12, 1
      %s18 = ssub.s32 %s12, 2
      %s19 = sadd.s32 %s12, 1
      %s20 = ssub.s32 %s12, %s19
      %p21 = scmp.eq.s32.totalorder %s20, 0
      %s23 = sadd.s32 %s22, 1
      %s24 = scalar_select %p21, %s22, %s23
      %p27 = pneg %p21
      %p28 = scmp.eq.s32.totalorder %s12, 1
      %p29 = por %p27, %p28
      %p30 = scmp.ne.s32.totalorder %s22, %s25
      %p31 = scmp.eq.s32.totalorder %s12, 0
      %p32 = por %p30, %p31
      %p33 = scmp.ne.s32.totalorder %s22, %s25
      %p34 = scmp.eq.s32.totalorder %s17, 1
      %p35 = por %p33, %p34
      %p36 = scmp.ne.s32.totalorder %s25, %s26
      %p37 = scmp.eq.s32.totalorder %s17, 0
      %p38 = por %p36, %p37
      %p39 = scmp.ne.s32.totalorder %s25, %s26
      %p40 = scmp.eq.s32.totalorder %s18, 1
      %p41 = por %p39, %p40
      %p43 = scmp.ne.s32.totalorder %s26, %s42
      %p44 = scmp.eq.s32.totalorder %s18, 0
      %p45 = por %p43, %p44
      %s47 = sadd.s32 %s46, 1
      %p50 = scmp.eq.s32.totalorder %s12, 1
      %p51 = scmp.ne.s32.totalorder %s46, %s48
      %p52 = scmp.eq.s32.totalorder %s12, 0
      %p53 = por %p51, %p52
      %p54 = scmp.ne.s32.totalorder %s46, %s48
      %p55 = scmp.eq.s32.totalorder %s17, 1
      %p56 = por %p54, %p55
      %p57 = scmp.ne.s32.totalorder %s48, %s49
      %p58 = scmp.eq.s32.totalorder %s17, 0
      %p59 = por %p57, %p58
      %p60 = scmp.ne.s32.totalorder %s48, %s49
      %p61 = scmp.eq.s32.totalorder %s18, 1
      %p62 = por %p60, %p61
      %p64 = scmp.ne.s32.totalorder %s49, %s63
      %p65 = scmp.eq.s32.totalorder %s18, 0
      %p66 = por %p64, %p65
      %s68 = sadd.s32 %s67, 1
      %p71 = scmp.eq.s32.totalorder %s12, 1
      %p72 = scmp.ne.s32.totalorder %s67, %s69
      %p73 = scmp.eq.s32.totalorder %s12, 0
      %p74 = por %p72, %p73
      %p75 = scmp.ne.s32.totalorder %s67, %s69
      %p76 = scmp.eq.s32.totalorder %s17, 1
      %p77 = por %p75, %p76
      %p78 = scmp.ne.s32.totalorder %s69, %s70
      %p79 = scmp.eq.s32.totalorder %s17, 0
      %p80 = por %p78, %p79
      %p81 = scmp.ne.s32.totalorder %s69, %s70
      %p82 = scmp.eq.s32.totalorder %s18, 1
      %p83 = por %p81, %p82
      %p85 = scmp.ne.s32.totalorder %s70, %s84
      %p86 = scmp.eq.s32.totalorder %s18, 0
      %p87 = por %p85, %p86
      %s88 = ssub.s32 %s12, %s19
      %p89 = scmp.eq.s32.totalorder %s88, 0
      %s91 = sadd.s32 %s90, 1
      %s92 = scalar_select %p89, %s90, %s91
      %p95 = pneg %p89
      %p96 = scmp.eq.s32.totalorder %s12, 1
      %p97 = por %p95, %p96
      %p98 = scmp.ne.s32.totalorder %s90, %s93
      %p99 = scmp.eq.s32.totalorder %s12, 0
      %p100 = por %p98, %p99
      %p101 = scmp.ne.s32.totalorder %s90, %s93
      %p102 = scmp.eq.s32.totalorder %s17, 1
      %p103 = por %p101, %p102
      %p104 = scmp.ne.s32.totalorder %s93, %s94
      %p105 = scmp.eq.s32.totalorder %s17, 0
      %p106 = por %p104, %p105
      %p107 = scmp.ne.s32.totalorder %s93, %s94
      %p108 = scmp.eq.s32.totalorder %s18, 1
      %p109 = por %p107, %p108
      %p111 = scmp.ne.s32.totalorder %s94, %s110
      %p112 = scmp.eq.s32.totalorder %s18, 0
      %p113 = por %p111, %p112
      %p114 = scmp.le.s32.totalorder 1, %s12
      %p115 = scmp.lt.s32.totalorder %s12, 3
      %p116 = pnand %p114, %p115
      %p117 = pneg %p116
      // Predicated region
      $region9: #{tpu_custom_call.1} parent=5 // pred_check
        _
      $region10: #{tpu_custom_call.1} parent=5 // pred_check_branch
        %119 = sbr.rel (%p116) target = $region12
      $region11: #{tpu_custom_call.1} parent=5 // pred_region
        %s120 = ssub.s32 %s12, 1
        // Predicated region
        $region13: #{tpu_custom_call.1} parent=11 // pred_check
          %p121 = pneg %p59
        $region14: #{tpu_custom_call.1} parent=11 // pred_check_branch
          %123 = sbr.rel (%p121) target = $region16
        $region15: #{tpu_custom_call.1} parent=11 // pred_region
          _
        $region16: #{tpu_custom_call.1} parent=11 // pred_fallthru
          _
        // Predicated region
        $region17: #{tpu_custom_call.1} parent=11 // pred_check
          %p124 = pneg %p80
        $region18: #{tpu_custom_call.1} parent=11 // pred_check_branch
          %126 = sbr.rel (%p124) target = $region20
        $region19: #{tpu_custom_call.1} parent=11 // pred_region
          _
        $region20: #{tpu_custom_call.1} parent=11 // pred_fallthru
          _
      $region12: #{tpu_custom_call.1} parent=5 // pred_fallthru
        _
      %p127 = scmp.lt.s32.totalorder %s12, 2
      // Predicated region
      $region21: #{tpu_custom_call.1} parent=5 // pred_check
        %p128 = pneg %p127
      $region22: #{tpu_custom_call.1} parent=5 // pred_check_branch
        %130 = sbr.rel (%p128) target = $region24
      $region23: #{tpu_custom_call.1} parent=5 // pred_region
        // Predicated region
        $region25: #{tpu_custom_call.1} parent=23 // pred_check
          %p131 = pneg %p32
        $region26: #{tpu_custom_call.1} parent=23 // pred_check_branch
          %133 = sbr.rel (%p131) target = $region28
        $region27: #{tpu_custom_call.1} parent=23 // pred_region
          %p134 = scmp.lt.s32.totalorder %s12, 1
          %s135 = scalar_select %p134, %s12, 1
          %s136 = smul.addr %s135, 4
          %s137 = smul.addr %s136, 8
          %s138 = scalar_lea.vmem %s0, %s137
        $region28: #{tpu_custom_call.1} parent=23 // pred_fallthru
          _
      $region24: #{tpu_custom_call.1} parent=5 // pred_fallthru
        _
      %p139 = scmp.le.s32.totalorder 1, %s12
      %p140 = scmp.lt.s32.totalorder %s12, 3
      %p141 = pnand %p139, %p140
      %p142 = pneg %p141
      // Predicated region
      $region29: #{tpu_custom_call.1} parent=5 // pred_check
        _
      $region30: #{tpu_custom_call.1} parent=5 // pred_check_branch
        %144 = sbr.rel (%p141) target = $region32
      $region31: #{tpu_custom_call.1} parent=5 // pred_region
        %s145 = ssub.s32 %s12, 1
        %p146 = scmp.lt.s32.totalorder %s17, 1
        %s147 = scalar_select %p146, %s17, 1
        %s148 = smul.addr %s147, 4
        %s149 = smul.addr %s148, 8
        %s150 = scalar_lea.vmem %s0, %s149
        %p151 = pneg %p38
        %p152 = pneg %p35
        %p153 = pneg %p59
        %p154 = pneg %p56
        %p155 = pneg %p80
        %p156 = pneg %p77
        %p157 = pneg %p106
        %p158 = pneg %p103
        %s159 = sand.u32 %s93, 1
        %s160 = scalar_lea.sflag [#allocation3], %s159
        %s161 = sand.u32 %s93, 1
        %s162 = smul.addr %s161, 8
        %s163 = scalar_lea.vmem [#allocation2], %s162
        %p164 = scmp.lt.s32.totalorder %s17, 1
        %s165 = scalar_select %p164, %s17, 1
        %s166 = smul.addr %s165, 4
        %s167 = smul.addr %s166, 8
        %s168 = scalar_lea.vmem %s0, %s167
        %v170 = vld [vmem:[%s1] sm:$0xff]
        %v171 = vld [vmem:[%s1 + $0x8] sm:$0xff]
        %v172 = vld [vmem:[%s1 + $0x10] sm:$0xff]
        %v173 = vld [vmem:[%s1 + $0x18] sm:$0xff]
        %v174 = vld [vmem:[%s1 + $0x20] sm:$0xff]
        %v175 = vld [vmem:[%s1 + $0x28] sm:$0xff]
        %v176 = vld [vmem:[%s1 + $0x30] sm:$0xff]
        %v177 = vld [vmem:[%s1 + $0x38] sm:$0xff]
        %v178 = vld [vmem:[%s1 + $0x40] sm:$0xff]
        %v179 = vld [vmem:[%s1 + $0x48] sm:$0xff]
        %v180 = vld [vmem:[%s1 + $0x50] sm:$0xff]
        %v181 = vld [vmem:[%s1 + $0x58] sm:$0xff]
        %v182 = vpack.c.bf16 %v171, %v170
        %v183 = vpack.c.bf16 %v173, %v172
        %v184 = vpack.c.bf16 %v175, %v174
        %v185 = vpack.c.bf16 %v177, %v176
        %v186 = vpack.c.bf16 %v179, %v178
        %v187 = vpack.c.bf16 %v181, %v180
        %v188 = vld [vmem:[%s2] sm:$0xff]
        %v189 = vld [vmem:[%s2 + $0x8] sm:$0xff]
        %v190 = vld [vmem:[%s2 + $0x10] sm:$0xff]
        %v191 = vld [vmem:[%s2 + $0x18] sm:$0xff]
        %v192 = vld [vmem:[%s2 + $0x20] sm:$0xff]
        %v193 = vld [vmem:[%s2 + $0x28] sm:$0xff]
        %v194 = vld [vmem:[%s2 + $0x30] sm:$0xff]
        %v195 = vld [vmem:[%s2 + $0x38] sm:$0xff]
        %v196 = vld [vmem:[%s2 + $0x40] sm:$0xff]
        %v197 = vld [vmem:[%s2 + $0x48] sm:$0xff]
        %v198 = vld [vmem:[%s2 + $0x50] sm:$0xff]
        %v199 = vld [vmem:[%s2 + $0x58] sm:$0xff]
        %v200 = vld [vmem:[%s168] sm:$0xff]
        %v201 = vld [vmem:[%s168 + $0x8] sm:$0xff]
        %v202 = vld [vmem:[%s168 + $0x10] sm:$0xff]
        %v203 = vld [vmem:[%s168 + $0x18] sm:$0xff]
        %v204 = vpack.c.bf16 %v201, %v200
        %v205 = vpack.c.bf16 %v203, %v202
        %207 = vset.pattern.permute.xlu0 0
        %208 = vperm.xlu0 %207, %v188
        %v209 = vpop.permute.xlu0 %208
        %212 = vset.pattern.permute.xlu0 0
        %213 = vperm.xlu0 %212, %v189
        %v214 = vpop.permute.xlu0 %213
        %217 = vset.pattern.permute.xlu0 0
        %218 = vperm.xlu0 %217, %v190
        %v219 = vpop.permute.xlu0 %218
        %222 = vset.pattern.permute.xlu0 0
        %223 = vperm.xlu0 %222, %v191
        %v224 = vpop.permute.xlu0 %223
        %227 = vset.pattern.permute.xlu0 0
        %228 = vperm.xlu0 %227, %v192
        %v229 = vpop.permute.xlu0 %228
        %232 = vset.pattern.permute.xlu0 0
        %233 = vperm.xlu0 %232, %v193
        %v234 = vpop.permute.xlu0 %233
        %237 = vset.pattern.permute.xlu0 0
        %238 = vperm.xlu0 %237, %v194
        %v239 = vpop.permute.xlu0 %238
        %242 = vset.pattern.permute.xlu0 0
        %243 = vperm.xlu0 %242, %v195
        %v244 = vpop.permute.xlu0 %243
        %247 = vset.pattern.permute.xlu0 0
        %248 = vperm.xlu0 %247, %v196
        %v249 = vpop.permute.xlu0 %248
        %252 = vset.pattern.permute.xlu0 0
        %253 = vperm.xlu0 %252, %v197
        %v254 = vpop.permute.xlu0 %253
        %257 = vset.pattern.permute.xlu0 0
        %258 = vperm.xlu0 %257, %v198
        %v259 = vpop.permute.xlu0 %258
        %262 = vset.pattern.permute.xlu0 0
        %263 = vperm.xlu0 %262, %v199
        %v264 = vpop.permute.xlu0 %263
        %vm266 = vcmask 261120
        %v268 = vsel %vm266, %v182, 0
        %v271 = vsel %vm266, %v183, 0
        %v274 = vsel %vm266, %v184, 0
        %v277 = vsel %vm266, %v185, 0
        %v280 = vsel %vm266, %v186, 0
        %v283 = vsel %vm266, %v187, 0
        %285 = vmatprep.subr.bf16.mxu0 0
        %286 = vmatpush1.bf16.msra.mxu0 %v204
        %287 = vmatprep.subr.bf16.mxu0 0
        %288 = vmatpush1.bf16.msra.mxu0 %v205
        %289 = vmatprep.subr.bf16.mxu0 0
        %290 = vmatpush1.bf16.msra.mxu0 0
        %291 = vmatprep.subr.bf16.mxu0 0
        %292 = vmatpush1.bf16.msra.mxu0 0
        %293 = vmatprep.subr.bf16.mxu0 0
        %294 = vmatpush1.bf16.msra.mxu0 0
        %295 = vmatprep.subr.bf16.mxu0 0
        %296 = vmatpush1.bf16.msra.mxu0 0
        %297 = vmatprep.subr.bf16.mxu0 0
        %298 = vmatpush1.bf16.msra.mxu0 0
        %299 = vmatprep.subr.bf16.mxu0 0
        %300 = vmatpush1.bf16.msra.mxu0 0
        %301 = vmatprep.subr.bf16.mxu0 0
        %302 = vmatpush1.bf16.msra.mxu0 0
        %303 = vmatprep.subr.bf16.mxu0 0
        %304 = vmatpush1.bf16.msra.mxu0 0
        %305 = vmatprep.subr.bf16.mxu0 0
        %306 = vmatpush1.bf16.msra.mxu0 0
        %307 = vmatprep.subr.bf16.mxu0 0
        %308 = vmatpush1.bf16.msra.mxu0 0
        %309 = vmatprep.subr.bf16.mxu0 0
        %310 = vmatpush1.bf16.msra.mxu0 0
        %311 = vmatprep.subr.bf16.mxu0 0
        %312 = vmatpush1.bf16.msra.mxu0 0
        %313 = vmatprep.subr.bf16.mxu0 0
        %314 = vmatpush1.bf16.msra.mxu0 0
        %315 = vmatprep.subr.bf16.mxu0 0
        %316 = vmatpush1.bf16.msra.mxu0 0
        %317 = vmatprep.mubr.bf16.mxu0 0
        %318 = vmatmul.mubr.bf16.gmra.mrb[0].mxu0 %v268
        %v319 = vpop.f32.mrb[0].mxu0
        %v320 = vadd.f32 %v209, %v319
        %v321 = vpop.f32.mrb[0].mxu0
        %v322 = vpop.f32.mrb[0].mxu0
        %v323 = vadd.f32 %v214, %v322
        %v324 = vpop.f32.mrb[0].mxu0
        %325 = vmatprep.mubr.bf16.mxu0 0
        %326 = vmatmul.mubr.bf16.gmra.mrb[0].mxu0 %v271
        %v327 = vpop.f32.mrb[0].mxu0
        %v328 = vadd.f32 %v219, %v327
        %v329 = vpop.f32.mrb[0].mxu0
        %v330 = vpop.f32.mrb[0].mxu0
        %v331 = vadd.f32 %v224, %v330
        %v332 = vpop.f32.mrb[0].mxu0
        %333 = vmatprep.mubr.bf16.mxu0 0
        %334 = vmatmul.mubr.bf16.gmra.mrb[0].mxu0 %v274
        %v335 = vpop.f32.mrb[0].mxu0
        %v336 = vadd.f32 %v229, %v335
        %v337 = vpop.f32.mrb[0].mxu0
        %v338 = vpop.f32.mrb[0].mxu0
        %v339 = vadd.f32 %v234, %v338
        %v340 = vpop.f32.mrb[0].mxu0
        %341 = vmatprep.mubr.bf16.mxu0 0
        %342 = vmatmul.mubr.bf16.gmra.mrb[0].mxu0 %v277
        %v343 = vpop.f32.mrb[0].mxu0
        %v344 = vadd.f32 %v239, %v343
        %v345 = vpop.f32.mrb[0].mxu0
        %v346 = vpop.f32.mrb[0].mxu0
        %v347 = vadd.f32 %v244, %v346
        %v348 = vpop.f32.mrb[0].mxu0
        %349 = vmatprep.mubr.bf16.mxu0 0
        %350 = vmatmul.mubr.bf16.gmra.mrb[0].mxu0 %v280
        %v351 = vpop.f32.mrb[0].mxu0
        %v352 = vadd.f32 %v249, %v351
        %v353 = vpop.f32.mrb[0].mxu0
        %v354 = vpop.f32.mrb[0].mxu0
        %v355 = vadd.f32 %v254, %v354
        %v356 = vpop.f32.mrb[0].mxu0
        %357 = vmatprep.mubr.bf16.mxu0 0
        %358 = vmatmul.mubr.bf16.gmra.mrb[0].mxu0 %v283
        %v359 = vpop.f32.mrb[0].mxu0
        %v360 = vadd.f32 %v259, %v359
        %v361 = vpop.f32.mrb[0].mxu0
        %v362 = vpop.f32.mrb[0].mxu0
        %v363 = vadd.f32 %v264, %v362
        %v364 = vpop.f32.mrb[0].mxu0
        %365 = vdwg.mxu0
        %366 = vxpose.xlu0.b32.start [1/16] %v320, 128
        %367 = vxpose.xlu0.b32.cont [2/16] %v323, 128
        %368 = vxpose.xlu0.b32.cont [3/16] %v328, 128
        %369 = vxpose.xlu0.b32.cont [4/16] %v331, 128
        %370 = vxpose.xlu0.b32.cont [5/16] 0.0, 128
        %371 = vxpose.xlu0.b32.cont [6/16] 0.0, 128
        %372 = vxpose.xlu0.b32.cont [7/16] 0.0, 128
        %373 = vxpose.xlu0.b32.cont [8/16] 0.0, 128
        %374 = vxpose.xlu0.b32.cont [9/16] 0.0, 128
        %375 = vxpose.xlu0.b32.cont [10/16] 0.0, 128
        %376 = vxpose.xlu0.b32.cont [11/16] 0.0, 128
        %377 = vxpose.xlu0.b32.cont [12/16] 0.0, 128
        %378 = vxpose.xlu0.b32.cont [13/16] 0.0, 128
        %379 = vxpose.xlu0.b32.cont [14/16] 0.0, 128
        %380 = vxpose.xlu0.b32.cont [15/16] 0.0, 128
        %381 = vxpose.xlu0.b32.end [16/16] 0.0, 128
        %v382 = vpop.trf.xlu0
        %v383 = vpop.trf.xlu0
        %v384 = vpop.trf.xlu0
        %v385 = vpop.trf.xlu0
        %v386 = vpop.trf.xlu0
        %v387 = vpop.trf.xlu0
        %v388 = vpop.trf.xlu0
        %v389 = vpop.trf.xlu0
        %v390 = vpop.trf.xlu0
        %v391 = vpop.trf.xlu0
        %v392 = vpop.trf.xlu0
        %v393 = vpop.trf.xlu0
        %v394 = vpop.trf.xlu0
        %v395 = vpop.trf.xlu0
        %v396 = vpop.trf.xlu0
        %v397 = vpop.trf.xlu0
        %v398 = vpack.c.bf16 %v382, %v382
        %v399 = vpack.c.bf16 %v339, %v336
        %v400 = vpack.c.bf16 %v347, %v344
        %v402 = vsel %vm266, %v398, 0
        %404 = vmatprep.subr.bf16.mxu0 0
        %405 = vmatpush1.bf16.msra.mxu0 %v399
        %406 = vmatprep.subr.bf16.mxu0 0
        %407 = vmatpush1.bf16.msra.mxu0 %v400
        %408 = vmatprep.subr.bf16.mxu0 0
        %409 = vmatpush1.bf16.msra.mxu0 0
        %410 = vmatprep.subr.bf16.mxu0 0
        %411 = vmatpush1.bf16.msra.mxu0 0
        %412 = vmatprep.subr.bf16.mxu0 0
        %413 = vmatpush1.bf16.msra.mxu0 0
        %414 = vmatprep.subr.bf16.mxu0 0
        %415 = vmatpush1.bf16.msra.mxu0 0
        %416 = vmatprep.subr.bf16.mxu0 0
        %417 = vmatpush1.bf16.msra.mxu0 0
        %418 = vmatprep.subr.bf16.mxu0 0
        %419 = vmatpush1.bf16.msra.mxu0 0
        %420 = vmatprep.subr.bf16.mxu0 0
        %421 = vmatpush1.bf16.msra.mxu0 0
        %422 = vmatprep.subr.bf16.mxu0 0
        %423 = vmatpush1.bf16.msra.mxu0 0
        %424 = vmatprep.subr.bf16.mxu0 0
        %425 = vmatpush1.bf16.msra.mxu0 0
        %426 = vmatprep.subr.bf16.mxu0 0
        %427 = vmatpush1.bf16.msra.mxu0 0
        %428 = vmatprep.subr.bf16.mxu0 0
        %429 = vmatpush1.bf16.msra.mxu0 0
        %430 = vmatprep.subr.bf16.mxu0 0
        %431 = vmatpush1.bf16.msra.mxu0 0
        %432 = vmatprep.subr.bf16.mxu0 0
        %433 = vmatpush1.bf16.msra.mxu0 0
        %434 = vmatprep.subr.bf16.mxu0 0
        %435 = vmatpush1.bf16.msra.mxu0 0
        %436 = vmatprep.mubr.bf16.mxu0 0
        %437 = vmatmul.mubr.bf16.gmra.mrb[0].mxu0 %v402
        %v438 = vpop.f32.mrb[0].mxu0
        %v439 = vadd.f32 0.0, %v438
        %v440 = vpop.f32.mrb[0].mxu0
        %v441 = vpop.f32.mrb[0].mxu0
        %v442 = vpop.f32.mrb[0].mxu0
        %443 = vdwg.mxu0
        %vm444 = vcmask 64512
        %v445 = vsel %vm444, %v439, -inf
        %446 = vmax.xlane.f32.xlu0 %v445
        %v447 = vpop.xlane.xlu0 %446
        %v448 = vsub.f32 %v439, %v447
        %v449 = vmul.f32 %v448, 1.442695
        %v450 = vpow.pop %v449
        %v451 = vsel %vm444, %v450, 0.0
        %452 = vadd.xlane.f32.xlu0 %v451
        %v453 = vpop.xlane.xlu0 %452
        %v454 = vpack.c.bf16 %v450, %v450
        %v455 = vpack.c.bf16 %v355, %v352
        %v456 = vpack.c.bf16 %v363, %v360
        %v458 = vsel %vm444, %v454, 0
        %v461 = vsel %vm444, %v455, 0
        %v464 = vsel %vm444, %v456, 0
        %466 = vmatprep.subr.bf16.mxu0 0
        %467 = vmatpush1.bf16.xpose.msra.mxu0 %v461
        %468 = vmatprep.subr.bf16.mxu0 0
        %469 = vmatpush1.bf16.xpose.msra.mxu0 %v464
        %470 = vmatprep.subr.bf16.mxu0 0
        %471 = vmatpush1.bf16.xpose.msra.mxu0 0
        %472 = vmatprep.subr.bf16.mxu0 0
        %473 = vmatpush1.bf16.xpose.msra.mxu0 0
        %474 = vmatprep.subr.bf16.mxu0 0
        %475 = vmatpush1.bf16.xpose.msra.mxu0 0
        %476 = vmatprep.subr.bf16.mxu0 0
        %477 = vmatpush1.bf16.xpose.msra.mxu0 0
        %478 = vmatprep.subr.bf16.mxu0 0
        %479 = vmatpush1.bf16.xpose.msra.mxu0 0
        %480 = vmatprep.subr.bf16.mxu0 0
        %481 = vmatpush1.bf16.xpose.msra.mxu0 0
        %482 = vmatprep.subr.bf16.mxu0 0
        %483 = vmatpush1.bf16.xpose.msra.mxu0 0
        %484 = vmatprep.subr.bf16.mxu0 0
        %485 = vmatpush1.bf16.xpose.msra.mxu0 0
        %486 = vmatprep.subr.bf16.mxu0 0
        %487 = vmatpush1.bf16.xpose.msra.mxu0 0
        %488 = vmatprep.subr.bf16.mxu0 0
        %489 = vmatpush1.bf16.xpose.msra.mxu0 0
        %490 = vmatprep.subr.bf16.mxu0 0
        %491 = vmatpush1.bf16.xpose.msra.mxu0 0
        %492 = vmatprep.subr.bf16.mxu0 0
        %493 = vmatpush1.bf16.xpose.msra.mxu0 0
        %494 = vmatprep.subr.bf16.mxu0 0
        %495 = vmatpush1.bf16.xpose.msra.mxu0 0
        %496 = vmatprep.subr.bf16.mxu0 0
        %497 = vmatpush1.bf16.xpose.msra.mxu0 0
        %498 = vmatprep.mubr.bf16.mxu0 0
        %499 = vmatmul.mubr.bf16.gmra.mrb[0].mxu0 %v458
        %v500 = vpop.f32.mrb[0].mxu0
        %v501 = vadd.f32 0.0, %v500
        %v502 = vpop.f32.mrb[0].mxu0
        %v503 = vpop.f32.mrb[0].mxu0
        %v504 = vpop.f32.mrb[0].mxu0
        %505 = vdwg.mxu0
        %v506 = vrcp.pop %v453
        %v507 = vmul.f32 %v501, %v506
        %508 = vst.msk [vmem:[%s163] sm:$0xff] %vm266, %v507
        %s509 = sand.u32 %s93, 1
        %s510 = scalar_lea.sflag [#allocation3], %s509
        %s511 = sand.u32 %s93, 1
        %s512 = smul.addr %s511, 8
        %s513 = scalar_lea.vmem [#allocation2], %s512
        // Predicated region
        $region33: #{tpu_custom_call.1} parent=31 // pred_check
          %p514 = pneg %p103
        $region34: #{tpu_custom_call.1} parent=31 // pred_check_branch
          %516 = sbr.rel (%p514) target = $region36
        $region35: #{tpu_custom_call.1} parent=31 // pred_region
          %s518 = ssub.s32 128, 128
          %519 = vsyncadd %s510, %s518
          %s520 = smul.addr %s17, 128
          %s521 = scalar_lea.hbm %s3, %s520
          %s523 = sshll.u32 %s513, 4
          %s524 = int_to_ptr.vmem [resolvable:$true] %s523
          %526 = dma.vmem_to_hbm [thread:$0]  %s524, 128, %s521, %s510
        $region36: #{tpu_custom_call.1} parent=31 // pred_fallthru
          _
      $region32: #{tpu_custom_call.1} parent=5 // pred_fallthru
        _
      %p527 = scmp.le.s32.totalorder 2, %s12
      // Predicated region
      $region37: #{tpu_custom_call.1} parent=5 // pred_check
        %p528 = pneg %p527
      $region38: #{tpu_custom_call.1} parent=5 // pred_check_branch
        %530 = sbr.rel (%p528) target = $region40
      $region39: #{tpu_custom_call.1} parent=5 // pred_region
        %s531 = ssub.s32 %s12, 2
        // Predicated region
        $region41: #{tpu_custom_call.1} parent=39 // pred_check
          %p532 = pneg %p109
        $region42: #{tpu_custom_call.1} parent=39 // pred_check_branch
          %534 = sbr.rel (%p532) target = $region44
        $region43: #{tpu_custom_call.1} parent=39 // pred_region
          %s535 = sand.u32 %s94, 1
          %s536 = scalar_lea.sflag [#allocation3], %s535
          %s537 = sand.u32 %s94, 1
          %s538 = smul.addr %s537, 8
          %s539 = scalar_lea.vmem [#allocation2], %s538
          %540 = dma.done %s536, 128
        $region44: #{tpu_custom_call.1} parent=39 // pred_fallthru
          _
      $region40: #{tpu_custom_call.1} parent=5 // pred_fallthru
        _
    $region6: #{tpu_custom_call.1} parent=1 // loop_footer
      %s16 = sadd.s32 1, %s12
    $region7: #{tpu_custom_call.1} parent=1 // loop_footer_branch
      %11 = sbr.rel target = $region3
    $region8: #{tpu_custom_call.1} parent=1 // loop_exit
      _
    %541 = vsyncpa [#allocation3], 1
    %s542 = scalar_lea.sflag [#allocation3], 1
    %543 = vsyncpa %s542, 1

</llo_original>
